<compile_context>
chip_gen: v6e
topology: v6e:2x2x1
jax: 0.10.0
libtpu: 0.0.40
codegen_flags: <defaults>
</compile_context>

<pallas_src>
import functools
import math

import jax
import jax.numpy as jnp
from jax.experimental import pallas as pl
from jax.experimental.pallas import tpu as pltpu


_NEG_INF = -1e30
_VMEM_LIMIT = 48 * 1024 * 1024  # safe on v5e/v6e (128 MiB) and v7x (64 MiB)


def _pick_tile(dim, target, mult):
    """Largest tile <= target that is a multiple of `mult` and divides `dim`.
    Falls back to the full dimension (always a legal block extent)."""
    if dim <= target:
        return dim
    t = (target // mult) * mult
    while t >= mult:
        if dim % t == 0:
            return t
        t -= mult
    return dim


# --------------------------- tiled linear kernel ----------------------------

def _matmul_bias_kernel(x_ref, w_ref, b_ref, o_ref, acc_ref):
    # grid = (M/tm, Dout/tn, Din/tk); reduction axis (k) is innermost.
    kk = pl.program_id(2)

    @pl.when(kk == 0)
    def _init():
        acc_ref[...] = jnp.zeros(acc_ref.shape, dtype=acc_ref.dtype)

    acc_ref[...] += jnp.dot(x_ref[...], w_ref[...],
                            preferred_element_type=jnp.float32)

    @pl.when(kk == pl.num_programs(2) - 1)
    def _finalize():
        o_ref[...] = (acc_ref[...] + b_ref[...].astype(jnp.float32)
                      ).astype(o_ref.dtype)


def linear(x, w, b, *, tm_target=512, tn_target=512, tk_target=1024):
    """x: (M, Din) @ w: (Din, Dout) + b: (Dout,)  — tiled/pipelined matmul."""
    M, Din = x.shape
    Dout = w.shape[1]
    tm = _pick_tile(M, tm_target, 8)        # sublane axis of x / out
    tn = _pick_tile(Dout, tn_target, 128)   # lane axis of w / out
    tk = _pick_tile(Din, tk_target, 128)    # lane axis of x, sublane of w
    b2 = b.reshape(1, Dout)
    grid = (M // tm, Dout // tn, Din // tk)

    return pl.pallas_call(
        _matmul_bias_kernel,
        out_shape=jax.ShapeDtypeStruct((M, Dout), x.dtype),
        grid_spec=pltpu.PrefetchScalarGridSpec(
            num_scalar_prefetch=0,
            grid=grid,
            in_specs=[
                pl.BlockSpec((tm, tk), lambda i, j, kk: (i, kk)),
                pl.BlockSpec((tk, tn), lambda i, j, kk: (kk, j)),
                pl.BlockSpec((1, tn), lambda i, j, kk: (0, j)),
            ],
            out_specs=pl.BlockSpec((tm, tn), lambda i, j, kk: (i, j)),
            scratch_shapes=[pltpu.VMEM((tm, tn), jnp.float32)],
        ),
        compiler_params=pltpu.CompilerParams(
            dimension_semantics=("parallel", "parallel", "arbitrary"),
            vmem_limit_bytes=_VMEM_LIMIT),
    )(x, w, b2)


# ----------------------- flash-style attention kernel -----------------------

def _flash_attn_kernel(q_ref, k_ref, v_ref, o_ref,
                       m_ref, l_ref, acc_ref, *, num_heads):
    # q_ref: (1, tq, D), k_ref/v_ref: (1, tk, D), o_ref: (1, tq, D)
    # scratch: m/l: (H, tq, 1), acc: (H, tq, hd) — persist across the kv axis.
    ki = pl.program_id(2)

    @pl.when(ki == 0)
    def _init():
        m_ref[...] = jnp.full(m_ref.shape, _NEG_INF, dtype=m_ref.dtype)
        l_ref[...] = jnp.zeros(l_ref.shape, dtype=l_ref.dtype)
        acc_ref[...] = jnp.zeros(acc_ref.shape, dtype=acc_ref.dtype)

    D = q_ref.shape[-1]
    hd = D // num_heads
    scale = 1.0 / math.sqrt(hd)

    # Fold 1/sqrt(d) into q (Nq*D elements) instead of the Nq*Nk score matrix.
    q = q_ref[0].astype(jnp.float32) * scale      # (tq, D)
    k = k_ref[0].astype(jnp.float32)              # (tk, D)
    v = v_ref[0].astype(jnp.float32)              # (tk, D)

    for h in range(num_heads):                    # static loop, small H
        lo, hi = h * hd, (h + 1) * hd
        q_h = q[:, lo:hi]                         # (tq, hd)
        k_h = k[:, lo:hi]                         # (tk, hd)
        v_h = v[:, lo:hi]                         # (tk, hd)

        # NT contraction: contract last axis of both operands (no k.T).
        s = jax.lax.dot_general(
            q_h, k_h, dimension_numbers=(((1,), (1,)), ((), ())),
            preferred_element_type=jnp.float32)   # (tq, tk)

        m_prev = m_ref[h]                         # (tq, 1)
        l_prev = l_ref[h]                         # (tq, 1)
        acc_prev = acc_ref[h]                     # (tq, hd)

        m_cur = jnp.max(s, axis=-1, keepdims=True)
        m_new = jnp.maximum(m_prev, m_cur)
        alpha = jnp.exp(m_prev - m_new)
        p = jnp.exp(s - m_new)                    # (tq, tk)

        m_ref[h] = m_new
        l_ref[h] = alpha * l_prev + jnp.sum(p, axis=-1, keepdims=True)
        acc_ref[h] = alpha * acc_prev + jax.lax.dot_general(
            p, v_h, dimension_numbers=(((1,), (0,)), ((), ())),
            preferred_element_type=jnp.float32)

    @pl.when(ki == pl.num_programs(2) - 1)
    def _finalize():
        outs = []
        for h in range(num_heads):
            inv_l = pl.reciprocal(l_ref[h], approx=True)   # EUP slot, ~free
            outs.append(acc_ref[h] * inv_l)
        # Lane-dense (width-D) output store; heads recombined in-kernel.
        o_ref[0] = jnp.concatenate(outs, axis=-1).astype(o_ref.dtype)


def flash_attention(q, k, v, *, num_heads, tq_target=256, tk_target=512):
    """q: (B, Nq, D), k/v: (B, Nk, D)  ->  (B, Nq, D). Heads handled in-kernel."""
    B, Nq, D = q.shape
    Nk = k.shape[1]
    hd = D // num_heads
    tq = _pick_tile(Nq, tq_target, 8)
    tk = _pick_tile(Nk, tk_target, 8)
    grid = (B, Nq // tq, Nk // tk)

    kernel = functools.partial(_flash_attn_kernel, num_heads=num_heads)
    return pl.pallas_call(
        kernel,
        out_shape=jax.ShapeDtypeStruct((B, Nq, D), q.dtype),
        grid_spec=pltpu.PrefetchScalarGridSpec(
            num_scalar_prefetch=0,
            grid=grid,
            in_specs=[
                pl.BlockSpec((1, tq, D), lambda b, qi, ki: (b, qi, 0)),
                pl.BlockSpec((1, tk, D), lambda b, qi, ki: (b, ki, 0)),
                pl.BlockSpec((1, tk, D), lambda b, qi, ki: (b, ki, 0)),
            ],
            # Same output block across the kv axis -> stays resident in VMEM.
            out_specs=pl.BlockSpec((1, tq, D), lambda b, qi, ki: (b, qi, 0)),
            scratch_shapes=[
                pltpu.VMEM((num_heads, tq, 1), jnp.float32),   # running max
                pltpu.VMEM((num_heads, tq, 1), jnp.float32),   # running sum
                pltpu.VMEM((num_heads, tq, hd), jnp.float32),  # accumulator
            ],
        ),
        compiler_params=pltpu.CompilerParams(
            dimension_semantics=("parallel", "parallel", "arbitrary"),
            vmem_limit_bytes=_VMEM_LIMIT),
    )(q, k, v)


# ------------------------------ module wrapper -------------------------------

class AttentionParams:
    """Deterministic parameter container mirroring the PyTorch module."""

    def __init__(self, embedding_dim, num_heads, downsample_rate=1, key=None):
        self.embedding_dim = embedding_dim
        self.internal_dim = embedding_dim // downsample_rate
        self.num_heads = num_heads
        assert self.internal_dim % num_heads == 0, \
            "num_heads must divide embedding_dim."
        if key is None:
            key = jax.random.PRNGKey(42)
        ks = jax.random.split(key, 8)
        E, D = embedding_dim, self.internal_dim

        def init(k, shape, fan_in):
            bound = 1.0 / math.sqrt(fan_in)
            return jax.random.uniform(k, shape, jnp.float32, -bound, bound)

        # weights stored (in_features, out_features) so x @ W matches torch.
        self.q_w = init(ks[0], (E, D), E); self.q_b = init(ks[1], (D,), E)
        self.k_w = init(ks[2], (E, D), E); self.k_b = init(ks[3], (D,), E)
        self.v_w = init(ks[4], (E, D), E); self.v_b = init(ks[5], (D,), E)
        self.o_w = init(ks[6], (D, E), D); self.o_b = init(ks[7], (E,), D)


def attention_forward(params: AttentionParams, q, k, v):
    """q: (B, Nq, E), k: (B, Nk, E), v: (B, Nk, E)  ->  (B, Nq, E)"""
    B, Nq, E = q.shape
    Nk = k.shape[1]
    D = params.internal_dim
    H = params.num_heads

    # Projections (tiled Pallas matmul+bias kernels over flattened tokens).
    qp = linear(q.reshape(B * Nq, E), params.q_w, params.q_b).reshape(B, Nq, D)
    kp = linear(k.reshape(B * Nk, E), params.k_w, params.k_b).reshape(B, Nk, D)
    vp = linear(v.reshape(B * Nk, E), params.v_w, params.v_b).reshape(B, Nk, D)

    # Flash attention; head split/merge happens inside the kernel.
    oh = flash_attention(qp, kp, vp, num_heads=H)        # (B, Nq, D)

    # Output projection.
    out = linear(oh.reshape(B * Nq, D), params.o_w, params.o_b)
    return out.reshape(B, Nq, E)


# ------------------------------ pure-JAX reference ---------------------------

def attention_reference(params: AttentionParams, q, k, v):
    B, Nq, E = q.shape
    Nk = k.shape[1]
    D, H = params.internal_dim, params.num_heads
    hd = D // H

    def sep(x, N):
        return x.reshape(B, N, H, hd).transpose(0, 2, 1, 3)

    qp = sep(q @ params.q_w + params.q_b, Nq)
    kp = sep(k @ params.k_w + params.k_b, Nk)
    vp = sep(v @ params.v_w + params.v_b, Nk)
    attn = jnp.einsum("bhqd,bhkd->bhqk", qp, kp) / math.sqrt(hd)
    attn = jax.nn.softmax(attn, axis=-1)
    o = jnp.einsum("bhqk,bhkd->bhqd", attn, vp)
    o = o.transpose(0, 2, 1, 3).reshape(B, Nq, D)
    return o @ params.o_w + params.o_b


# ----------------------------------- main ------------------------------------

if __name__ == "__main__":
    B, Nq, Nk = 2, 8, 8
    embedding_dim, num_heads, downsample_rate = 32, 4, 1

    key = jax.random.PRNGKey(0)
    kq, kk, kv, kp = jax.random.split(key, 4)
    q = jax.random.normal(kq, (B, Nq, embedding_dim), jnp.float32)
    k = jax.random.normal(kk, (B, Nk, embedding_dim), jnp.float32)
    v = jax.random.normal(kv, (B, Nk, embedding_dim), jnp.float32)

    params = AttentionParams(embedding_dim, num_heads, downsample_rate, key=kp)

    out = attention_forward(params, q, k, v)
    out = jax.block_until_ready(out)

    ref = attention_reference(params, q, k, v)

    assert out.shape == (B, Nq, embedding_dim)
    assert jnp.all(jnp.isfinite(out))
    max_err = float(jnp.max(jnp.abs(out - ref)))
    assert max_err < 5e-2, f"mismatch vs reference: {max_err}"
    print("KERNEL_OK")
</pallas_src>

<mosaic_0001>
module attributes {stable_mosaic.version = 11 : i64} {
  func.func @_matmul_bias_kernel(%arg0: i32, %arg1: i32, %arg2: i32, %arg3: memref<16x32xf32, #tpu.memory_space<vmem>>, %arg4: memref<32x32xf32, #tpu.memory_space<vmem>>, %arg5: memref<1x32xf32, #tpu.memory_space<vmem>>, %arg6: memref<16x32xf32, #tpu.memory_space<vmem>>, %arg7: memref<16x32xf32, #tpu.memory_space<vmem>>) attributes {dimension_semantics = [#tpu.dimension_semantics<parallel>, #tpu.dimension_semantics<parallel>, #tpu.dimension_semantics<arbitrary>], iteration_bounds = array<i64: 1, 1, 1>, scalar_prefetch = 0 : i64, scratch_operands = 1 : i64, tpu.core_type = #tpu.core_type<tc>, window_params = [{transform_indices = @transform_0, window_bounds = array<i64: 16, 32>}, {transform_indices = @transform_1, window_bounds = array<i64: 32, 32>}, {transform_indices = @transform_2, window_bounds = array<i64: 1, 32>}, {transform_indices = @transform_3, window_bounds = array<i64: 16, 32>}]} {
    %c0_i32 = arith.constant 0 : i32
    %0 = arith.cmpi eq, %arg2, %c0_i32 : i32
    %1 = arith.extui %0 : i1 to i32
    %c0_i32_0 = arith.constant 0 : i32
    %2 = arith.cmpi ne, %1, %c0_i32_0 : i32
    scf.if %2 {
      %cst_10 = arith.constant 0.000000e+00 : f32
      %12 = vector.broadcast %cst_10 : f32 to vector<16x32xf32>
      %c0_11 = arith.constant 0 : index
      %c0_12 = arith.constant 0 : index
      %13 = vector.load %arg7[%c0_11, %c0_12] : memref<16x32xf32, #tpu.memory_space<vmem>>, vector<16x32xf32>
      tpu.vector_store %arg7[%c0_11, %c0_12], %12 {strides = array<i32>} : memref<16x32xf32, #tpu.memory_space<vmem>>, vector<16x32xf32>,
    } else {
    }
    %c0 = arith.constant 0 : index
    %c0_1 = arith.constant 0 : index
    %3 = vector.load %arg7[%c0, %c0_1] : memref<16x32xf32, #tpu.memory_space<vmem>>, vector<16x32xf32>
    %c0_2 = arith.constant 0 : index
    %c0_3 = arith.constant 0 : index
    %4 = vector.load %arg3[%c0_2, %c0_3] : memref<16x32xf32, #tpu.memory_space<vmem>>, vector<16x32xf32>
    %c0_4 = arith.constant 0 : index
    %c0_5 = arith.constant 0 : index
    %5 = vector.load %arg4[%c0_4, %c0_5] : memref<32x32xf32, #tpu.memory_space<vmem>>, vector<32x32xf32>
    %cst = arith.constant dense<0.000000e+00> : vector<16x32xf32>
    %6 = tpu.matmul %4, %5, %cst {dimension_numbers = #tpu.dot_dimension_numbers<[1], [0], [0], [1], [0, 0, 1, 1], [], []>} : vector<16x32xf32>, vector<32x32xf32>, vector<16x32xf32> -> vector<16x32xf32>
    %7 = arith.addf %3, %6 : vector<16x32xf32>
    %c0_6 = arith.constant 0 : index
    %c0_7 = arith.constant 0 : index
    %8 = vector.load %arg7[%c0_6, %c0_7] : memref<16x32xf32, #tpu.memory_space<vmem>>, vector<16x32xf32>
    tpu.vector_store %arg7[%c0_6, %c0_7], %7 {strides = array<i32>} : memref<16x32xf32, #tpu.memory_space<vmem>>, vector<16x32xf32>,
    %c0_i32_8 = arith.constant 0 : i32
    %9 = arith.cmpi eq, %arg2, %c0_i32_8 : i32
    %10 = arith.extui %9 : i1 to i32
    %c0_i32_9 = arith.constant 0 : i32
    %11 = arith.cmpi ne, %10, %c0_i32_9 : i32
    scf.if %11 {
      %c0_10 = arith.constant 0 : index
      %c0_11 = arith.constant 0 : index
      %12 = vector.load %arg7[%c0_10, %c0_11] : memref<16x32xf32, #tpu.memory_space<vmem>>, vector<16x32xf32>
      %c0_12 = arith.constant 0 : index
      %c0_13 = arith.constant 0 : index
      %13 = vector.load %arg5[%c0_12, %c0_13] : memref<1x32xf32, #tpu.memory_space<vmem>>, vector<1x32xf32>
      %14 = vector.broadcast %13 : vector<1x32xf32> to vector<16x32xf32>
      %15 = arith.addf %12, %14 : vector<16x32xf32>
      %c0_14 = arith.constant 0 : index
      %c0_15 = arith.constant 0 : index
      %16 = vector.load %arg6[%c0_14, %c0_15] : memref<16x32xf32, #tpu.memory_space<vmem>>, vector<16x32xf32>
      tpu.vector_store %arg6[%c0_14, %c0_15], %15 {strides = array<i32>} : memref<16x32xf32, #tpu.memory_space<vmem>>, vector<16x32xf32>,
    } else {
    }
    return
  }
  func.func @transform_0(%arg0: i32, %arg1: i32, %arg2: i32) -> (i32, i32) {
    %c0_i32 = arith.constant 0 : i32
    return %arg0, %arg2 : i32, i32
  }
  func.func @transform_1(%arg0: i32, %arg1: i32, %arg2: i32) -> (i32, i32) {
    %c0_i32 = arith.constant 0 : i32
    return %arg2, %arg1 : i32, i32
  }
  func.func @transform_2(%arg0: i32, %arg1: i32, %arg2: i32) -> (i32, i32) {
    %c0_i32 = arith.constant 0 : i32
    %c0_i32_0 = arith.constant 0 : i32
    return %c0_i32, %arg1 : i32, i32
  }
  func.func @transform_3(%arg0: i32, %arg1: i32, %arg2: i32) -> (i32, i32) {
    %c0_i32 = arith.constant 0 : i32
    return %arg0, %arg1 : i32, i32
  }
}

</mosaic_0001>

<llo_original>
// kernel: tpu_custom_call.1
$region0: #{tpu_custom_call.1}
  #allocation0 [shape = 'u32[]', space=smem, size = 0x4, offset = 0x4, fixed_abs, tag = 'smem constant byte address 0x4 - core index']
  #allocation1 [shape = 'u32[144,128]{1,0:T(1,128)}', space=vmem, size = 0x12000, scoped, tag = 'internal scratch']
  #allocation2 [shape = 'f32[16,32]{1,0:T(8,128)}', space=vmem, size = 0x2000, scoped, tag = 'scratch operand']
  %s0 = inlined_call_operand.hbm [shape: f32[16,32], index: 0, kind: input, shape index: {}]
  %s1 = inlined_call_operand.hbm [shape: f32[32,32], index: 1, kind: input, shape index: {}]
  %s2 = inlined_call_operand.vmem [shape: f32[1,32], index: 2, kind: input, shape index: {}]
  %s3 = inlined_call_operand.hbm [shape: f32[16,32], index: 3, kind: output, shape index: {}]
  %s4 = sld [smem:[#allocation0]]
  $region38: #{tpu_custom_call.1} parent=0
    _
  %s6 = ssub.s32 1, %s4
  %s7 = scalar_select 0, %s6, %s4
  $region1: #{tpu_custom_call.1} parent=0
    #allocation3 [shape = 'u8[8192]{0}', space=vmem, size = 0x2000, scoped, tag = 'input window, operand 0, single buffered']
    #allocation4 [shape = 's32[1]{0}', space=sflag, size = 0x4, scoped, tag = 'scoped memory for tpu_custom_call.1']
    #allocation5 [shape = 's32[1]{0}', space=sflag, size = 0x4, scoped, tag = 'scoped memory for tpu_custom_call.1']
    #allocation6 [shape = 'u8[16384]{0}', space=vmem, size = 0x4000, scoped, tag = 'input window, operand 1, single buffered']
    #allocation7 [shape = 's32[1]{0}', space=sflag, size = 0x4, scoped, tag = 'scoped memory for tpu_custom_call.1']
    #allocation8 [shape = 'u8[8192]{0}', space=vmem, size = 0x2000, scoped, tag = 'output window, operand 0, single buffered']
    %8 = vsyncpa [#allocation4], 0
    %9 = vsyncpa [#allocation7], 0
    %10 = vsyncpa [#allocation5], 0
    // Predicated region
    $region2: #{tpu_custom_call.1} parent=1 // pred_check
      _
    $region3: #{tpu_custom_call.1} parent=1 // pred_check_branch
      %12 = sbr.rel (0) target = $region5
    $region4: #{tpu_custom_call.1} parent=1 // pred_region
      %s14 = ssub.s32 256, 256
      %15 = vsyncadd [#allocation4], %s14
      %s16 = sshll.u32 [#allocation3], 4
      %s17 = int_to_ptr.vmem [resolvable:$true] %s16
      %22 = dma.hbm_to_vmem [thread:$0]  %s0, 256, %s17, [#allocation4], 128, 128, 8
    $region5: #{tpu_custom_call.1} parent=1 // pred_fallthru
      _
    // Predicated region
    $region6: #{tpu_custom_call.1} parent=1 // pred_check
      _
    $region7: #{tpu_custom_call.1} parent=1 // pred_check_branch
      %24 = sbr.rel (0) target = $region9
    $region8: #{tpu_custom_call.1} parent=1 // pred_region
      %s26 = ssub.s32 512, 512
      %27 = vsyncadd [#allocation7], %s26
      %s28 = sshll.u32 [#allocation6], 4
      %s29 = int_to_ptr.vmem [resolvable:$true] %s28
      %34 = dma.hbm_to_vmem [thread:$0]  %s1, 512, %s29, [#allocation7], 128, 128, 8
    $region9: #{tpu_custom_call.1} parent=1 // pred_fallthru
      _
    // Predicated region
    $region10: #{tpu_custom_call.1} parent=1 // pred_check
      _
    $region11: #{tpu_custom_call.1} parent=1 // pred_check_branch
      %36 = sbr.rel (0) target = $region13
    $region12: #{tpu_custom_call.1} parent=1 // pred_region
      _
    $region13: #{tpu_custom_call.1} parent=1 // pred_fallthru
      _
    // Predicated region
    $region14: #{tpu_custom_call.1} parent=1 // pred_check
      _
    $region15: #{tpu_custom_call.1} parent=1 // pred_check_branch
      %38 = sbr.rel (0) target = $region17
    $region16: #{tpu_custom_call.1} parent=1 // pred_region
      %39 = dma.done [#allocation4], 256
    $region17: #{tpu_custom_call.1} parent=1 // pred_fallthru
      _
    // Predicated region
    $region18: #{tpu_custom_call.1} parent=1 // pred_check
      _
    $region19: #{tpu_custom_call.1} parent=1 // pred_check_branch
      %41 = sbr.rel (0) target = $region21
    $region20: #{tpu_custom_call.1} parent=1 // pred_region
      %42 = dma.done [#allocation7], 512
    $region21: #{tpu_custom_call.1} parent=1 // pred_fallthru
      _
    %p43 = scmp.eq.s32.totalorder 0, 0
    // Predicated region
    $region22: #{tpu_custom_call.1} parent=1 // pred_check
      %p44 = pneg %p43
    $region23: #{tpu_custom_call.1} parent=1 // pred_check_branch
      %46 = sbr.rel (%p44) target = $region25
    $region24: #{tpu_custom_call.1} parent=1 // pred_region
      %vm47 = vcmask 261120
      %48 = vst.msk [vmem:[#allocation2] sm:$0xff] %vm47, 0.0
      %49 = vst.msk [vmem:[#allocation2 + $0x8] sm:$0xff] %vm47, 0.0
    $region25: #{tpu_custom_call.1} parent=1 // pred_fallthru
      _
    %v50 = vld [vmem:[#allocation2] sm:$0xff]
    %v51 = vld [vmem:[#allocation2 + $0x8] sm:$0xff]
    %v52 = vld [vmem:[#allocation3] sm:$0xff]
    %v53 = vld [vmem:[#allocation3 + $0x8] sm:$0xff]
    %v54 = vld [vmem:[#allocation6] sm:$0xff]
    %v55 = vld [vmem:[#allocation6 + $0x8] sm:$0xff]
    %v56 = vld [vmem:[#allocation6 + $0x10] sm:$0xff]
    %v57 = vld [vmem:[#allocation6 + $0x18] sm:$0xff]
    %vm58 = vcmask 261120
    %v60 = vsel %vm58, %v52, 0
    %v63 = vsel %vm58, %v53, 0
    %65 = vmatprep.subr.mxu0 0.0
    %66 = vmatpush1.msra.mxu0 0.0
    %67 = vmatprep.subr.mxu0 0.0
    %68 = vmatpush1.msra.mxu0 0.0
    %69 = vmatprep.subr.mxu0 0.0
    %70 = vmatpush1.msra.mxu0 0.0
    %71 = vmatprep.subr.mxu0 0.0
    %72 = vmatpush1.msra.mxu0 0.0
    %73 = vmatprep.subr.mxu0 0.0
    %74 = vmatpush1.msra.mxu0 0.0
    %75 = vmatprep.subr.mxu0 0.0
    %76 = vmatpush1.msra.mxu0 0.0
    %77 = vmatprep.subr.mxu0 0.0
    %78 = vmatpush1.msra.mxu0 0.0
    %79 = vmatprep.subr.mxu0 0.0
    %80 = vmatpush1.msra.mxu0 0.0
    %81 = vmatprep.subr.mxu0 0.0
    %82 = vmatpush1.msra.mxu0 0.0
    %83 = vmatprep.subr.mxu0 0.0
    %84 = vmatpush1.msra.mxu0 0.0
    %85 = vmatprep.subr.mxu0 0.0
    %86 = vmatpush1.msra.mxu0 0.0
    %87 = vmatprep.subr.mxu0 0.0
    %88 = vmatpush1.msra.mxu0 0.0
    %89 = vmatprep.subr.mxu0 0.0
    %90 = vmatpush1.msra.mxu0 %v57
    %91 = vmatprep.subr.mxu0 0.0
    %92 = vmatpush1.msra.mxu0 %v56
    %93 = vmatprep.subr.mxu0 0.0
    %94 = vmatpush1.msra.mxu0 %v55
    %95 = vmatprep.subr.mxu0 0.0
    %96 = vmatpush1.msra.mxu0 %v54
    %97 = vmatprep.subr.mxu0 0.0
    %98 = vmatpush2.msra.mxu0 0.0
    %99 = vmatprep.subr.mxu0 0.0
    %100 = vmatpush2.msra.mxu0 0.0
    %101 = vmatprep.subr.mxu0 0.0
    %102 = vmatpush2.msra.mxu0 0.0
    %103 = vmatprep.subr.mxu0 0.0
    %104 = vmatpush2.msra.mxu0 0.0
    %105 = vmatprep.subr.mxu0 0.0
    %106 = vmatpush2.msra.mxu0 0.0
    %107 = vmatprep.subr.mxu0 0.0
    %108 = vmatpush2.msra.mxu0 0.0
    %109 = vmatprep.subr.mxu0 0.0
    %110 = vmatpush2.msra.mxu0 0.0
    %111 = vmatprep.subr.mxu0 0.0
    %112 = vmatpush2.msra.mxu0 0.0
    %113 = vmatprep.subr.mxu0 0.0
    %114 = vmatpush2.msra.mxu0 0.0
    %115 = vmatprep.subr.mxu0 0.0
    %116 = vmatpush2.msra.mxu0 0.0
    %117 = vmatprep.subr.mxu0 0.0
    %118 = vmatpush2.msra.mxu0 0.0
    %119 = vmatprep.subr.mxu0 0.0
    %120 = vmatpush2.msra.mxu0 0.0
    %121 = vmatprep.subr.mxu0 0.0
    %122 = vmatpush2.msra.mxu0 0.0
    %123 = vmatprep.subr.mxu0 0.0
    %124 = vmatpush2.msra.mxu0 0.0
    %125 = vmatprep.subr.mxu0 0.0
    %126 = vmatpush2.msra.mxu0 0.0
    %127 = vmatprep.subr.mxu0 0.0
    %128 = vmatpush2.msra.mxu0 0.0
    %129 = vmatprep.mubr.f32.mxu0 0.0
    %130 = vmatmul.mubr.f32.gmra.mxu0 %v60
    %v131 = vpop.f32.mrf.mxu0
    %v132 = vadd.f32 0.0, %v131
    %v133 = vpop.f32.mrf.mxu0
    %134 = vmatprep.mubr.f32.mxu0 0.0
    %135 = vmatmul.mubr.f32.gmra.mxu0 %v63
    %v136 = vpop.f32.mrf.mxu0
    %v137 = vadd.f32 0.0, %v136
    %v138 = vpop.f32.mrf.mxu0
    %139 = vdwg.mxu0
    %v140 = vadd.f32 %v50, %v132
    %v141 = vadd.f32 %v51, %v137
    %142 = vst.msk [vmem:[#allocation2] sm:$0xff] %vm58, %v140
    %143 = vst.msk [vmem:[#allocation2 + $0x8] sm:$0xff] %vm58, %v141
    // Predicated region
    $region26: #{tpu_custom_call.1} parent=1 // pred_check
      %p144 = pneg %p43
    $region27: #{tpu_custom_call.1} parent=1 // pred_check_branch
      %146 = sbr.rel (%p144) target = $region29
    $region28: #{tpu_custom_call.1} parent=1 // pred_region
      %v147 = vld [vmem:[#allocation2] sm:$0xff]
      %v148 = vld [vmem:[#allocation2 + $0x8] sm:$0xff]
      %v149 = vld [vmem:[%s2] sm:$0x1]
      %v151 = vlaneseq
      %v152 = vshrl.u32 %v151, 7
      %v153 = vsub.s32 0, %v152
      %v154 = vrot.slane %v149, %v153
      %v156 = vadd.f32 %v147, %v154
      %v157 = vadd.f32 %v148, %v154
      %158 = vst.msk [vmem:[#allocation8] sm:$0xff] %vm58, %v156
      %159 = vst.msk [vmem:[#allocation8 + $0x8] sm:$0xff] %vm58, %v157
    $region29: #{tpu_custom_call.1} parent=1 // pred_fallthru
      _
    // Predicated region
    $region30: #{tpu_custom_call.1} parent=1 // pred_check
      _
    $region31: #{tpu_custom_call.1} parent=1 // pred_check_branch
      %161 = sbr.rel (0) target = $region33
    $region32: #{tpu_custom_call.1} parent=1 // pred_region
      %s163 = ssub.s32 256, 256
      %164 = vsyncadd [#allocation5], %s163
      %s165 = sshll.u32 [#allocation8], 4
      %s166 = int_to_ptr.vmem [resolvable:$true] %s165
      %171 = dma.vmem_to_hbm [thread:$0]  %s166, 256, %s3, [#allocation5], 128, 128, 8
    $region33: #{tpu_custom_call.1} parent=1 // pred_fallthru
      _
    // Predicated region
    $region34: #{tpu_custom_call.1} parent=1 // pred_check
      _
    $region35: #{tpu_custom_call.1} parent=1 // pred_check_branch
      %173 = sbr.rel (0) target = $region37
    $region36: #{tpu_custom_call.1} parent=1 // pred_region
      %174 = dma.done [#allocation5], 256
    $region37: #{tpu_custom_call.1} parent=1 // pred_fallthru
      _
    %175 = vsyncpa [#allocation4], 1
    %176 = vsyncpa [#allocation7], 1
    %177 = vsyncpa [#allocation5], 1

</llo_original>
